<compile_context>
chip_gen: v7x
topology: tpu7x:2x2x1
jax: 0.10.0
libtpu: 0.0.40
codegen_flags: <defaults>
</compile_context>

<pallas_src>
import math

import jax
import jax.numpy as jnp
import numpy as np
from jax.experimental import pallas as pl
from jax.experimental.pallas import tpu as pltpu


def make_selfattn_kernel(head_dim: int, npos_max: int, seq_len: int,
                         block_b: int, tq: int, kt: int, matmul_dtype):
    scale = 1.0 / math.sqrt(head_dim)
    nt = seq_len // kt
    rows = block_b * tq
    P = npos_max

    def body(q_ref, k_ref, v_ref, lm_ref, pe_ref, rc_ref, sfx_ref, o_ref):
        q = q_ref[...]                        # (Bt, tq, D) f32
        k = k_ref[...]                        # (Bt, S,  D) f32 (resident per batch)
        v = v_ref[...]                        # (Bt, S,  D)

        # Fold the 1/sqrt(D) scale into K (S*D elems) instead of the (tq,S) logits.
        k_s = (k * scale).astype(matmul_dtype)

        # attn_logits = q @ k^T / sqrt(D)  (bf16 MXU inputs, f32 accumulation)
        logits = jnp.einsum("bqd,bkd->bqk", q.astype(matmul_dtype), k_s,
                            preferred_element_type=jnp.float32)   # (Bt, tq, S)
        # Additive log-mask: (tq,S) resident slice broadcasts, or (Bt,tq,S) streamed.
        logits = logits + lm_ref[...]

        logits2 = logits.reshape(rows, seq_len)                   # (rows, S)

        # ---- CoPE contextual positions (kept in f32) ----
        gates = jax.nn.sigmoid(logits2)
        if nt == 1:
            # pos[:, j] = sum_{k >= j} gates[:, k]   (single triangular matmul)
            pos = jnp.dot(gates, rc_ref[...], preferred_element_type=jnp.float32)
        else:
            # Blocked two-level reverse cumsum: within-tile triangular matmul plus a
            # suffix sum of tile totals (strictly-lower-triangular (nt,nt) operator).
            g2 = gates.reshape(rows * nt, kt)
            within = jnp.dot(g2, rc_ref[...],
                             preferred_element_type=jnp.float32)   # (rows*nt, kt)
            tile_tot = jnp.sum(g2, axis=-1, keepdims=True).reshape(rows, nt)
            sfx = jnp.dot(tile_tot, sfx_ref[...],
                          preferred_element_type=jnp.float32)      # (rows, nt)
            pos = (within + sfx.reshape(rows * nt, 1)).reshape(rows, seq_len)
        pos = jnp.minimum(pos, float(P - 1))

        # logits_int = q @ pos_emb -> (rows, P)   (tiny; kept f32)
        q2 = q.reshape(rows, head_dim)
        logits_int = jnp.dot(q2, pe_ref[...], preferred_element_type=jnp.float32)

        # Floor/frac interpolation via a compare+select chain:
        #   cope = L[floor] + frac * (L[ceil] - L[floor])
        # ~3 VALU ops per p over (rows,S) vs ~6 for the hat-weight MAC form.
        fl = jnp.floor(pos)
        frac = pos - fl
        col_fl = jnp.zeros_like(pos)
        col_cl = jnp.zeros_like(pos)
        for p in range(P):
            m = fl == float(p)
            pc = min(p + 1, P - 1)
            col_fl = jnp.where(m, logits_int[:, p:p + 1], col_fl)
            col_cl = jnp.where(m, logits_int[:, pc:pc + 1], col_cl)
        cope = col_fl + frac * (col_cl - col_fl)
        # ---- end CoPE ----

        logits2 = logits2 + cope

        # Softmax with deferred normalization: normalize after the AV matmul so the
        # per-row reciprocal multiplies (rows, D) instead of (rows, S).
        m_row = jnp.max(logits2, axis=-1, keepdims=True)
        e = jnp.exp(logits2 - m_row)
        l = jnp.sum(e, axis=-1, keepdims=True)

        e3 = e.reshape(block_b, tq, seq_len).astype(matmul_dtype)
        out = jnp.einsum("bqk,bkd->bqd", e3, v.astype(matmul_dtype),
                         preferred_element_type=jnp.float32)
        inv_l = pl.reciprocal(l, approx=True).reshape(block_b, tq, 1)
        o_ref[...] = (out * inv_l).astype(o_ref.dtype)

    if nt == 1:
        # No suffix operator needed -> drop the arg (avoids a degenerate (1,1) input).
        def kernel(q_ref, k_ref, v_ref, lm_ref, pe_ref, rc_ref, o_ref):
            return body(q_ref, k_ref, v_ref, lm_ref, pe_ref, rc_ref, None, o_ref)
        return kernel
    return body


def _largest_divisor_leq(n, cap):
    d = max(1, min(n, cap))
    while n % d:
        d -= 1
    return d


def _pick_tile(S, preferred=(256, 128)):
    if S <= 256:
        return S
    for t in preferred:
        if S % t == 0:
            return t
    return _largest_divisor_leq(S, 256)


def _vmem_limit_bytes():
    try:
        cap = int(pltpu.get_tpu_info().vmem_capacity_bytes)
    except Exception:
        cap = 64 << 20          # conservative fallback (v7x per-core VMEM)
    return max(32 << 20, min(int(cap * 0.75), 100 << 20))


def _pick_block_b(B, S, D, P, tq, kt, mask_shared, vmem_limit):
    """Largest divisor of B whose working set fits VMEM, accounting for double
    buffering and the live (block_b*tq, S) f32 intermediates; keep >= 2 grid
    steps so v7x's two TensorCores both get work."""
    nt = S // kt
    budget = int(vmem_limit * 0.8)
    resident = 4 * (kt * kt + nt * nt + D * P) + 2 * 4 * tq * S   # rc, sfx, pe, lm blk

    def per_b(bb):
        stream = 2 * 4 * (2 * bb * tq * D + 2 * bb * S * D)       # q, out, k, v (x2 buf)
        if not mask_shared:
            stream += 2 * 4 * bb * tq * S                         # streamed mask
        live = 4 * (6 * bb * tq * S + bb * tq * P + bb * S * D)   # f32 temporaries
        return stream + live

    bb = B
    while bb > 1 and resident + per_b(bb) > budget:
        bb = _largest_divisor_leq(B, bb - 1)
    if (B // bb) * (S // tq) < 2 and B >= 2:
        bb = _largest_divisor_leq(B, B // 2)
    return bb


def self_attn_pallas(query, key, val, mask, pos_emb, npos_max, *,
                     block_b=None, query_tile=None, key_tile=None,
                     matmul_dtype=jnp.bfloat16):
    """CoPE self-attention forward. matmul_dtype=jnp.float32 for bit-tight checks."""
    B, S, D = query.shape
    P = npos_max
    assert S % 8 == 0, "seq_len must be a multiple of 8 (sublane tiling)"

    mask_shared = (mask.ndim == 2) or (mask.shape[0] == 1)
    log_mask = jnp.log(mask.astype(jnp.float32))
    if mask_shared:
        log_mask = log_mask.reshape(S, S)

    kt = key_tile if key_tile is not None else _pick_tile(S)
    tq = query_tile if query_tile is not None else _pick_tile(S)
    assert S % kt == 0 and S % tq == 0 and tq % 8 == 0
    nt = S // kt

    vmem_limit = _vmem_limit_bytes()
    if block_b is None:
        block_b = _pick_block_b(B, S, D, P, tq, kt, mask_shared, vmem_limit)
    assert B % block_b == 0, "block_b must divide the batch"

    pe2 = pos_emb.reshape(D, P).astype(jnp.float32)
    # Within-tile reverse-cumsum operator: rc[k, j] = 1 iff k >= j.
    rc = jnp.asarray(np.tril(np.ones((kt, kt), np.float32)))
    # Strict suffix-sum operator over key tiles: sfx[a, b] = 1 iff a > b.
    sfx = jnp.asarray(np.tril(np.ones((nt, nt), np.float32), k=-1))

    kernel = make_selfattn_kernel(D, P, S, block_b, tq, kt, matmul_dtype)

    if mask_shared:
        lm_spec = pl.BlockSpec((tq, S), lambda b, qi: (qi, 0))            # resident slab
    else:
        lm_spec = pl.BlockSpec((block_b, tq, S), lambda b, qi: (b, qi, 0))  # streamed

    in_specs = [
        pl.BlockSpec((block_b, tq, D), lambda b, qi: (b, qi, 0)),   # query (q tile)
        pl.BlockSpec((block_b, S, D), lambda b, qi: (b, 0, 0)),     # key (resident per b)
        pl.BlockSpec((block_b, S, D), lambda b, qi: (b, 0, 0)),     # val (resident per b)
        lm_spec,                                                    # log-mask
        pl.BlockSpec((D, P), lambda b, qi: (0, 0)),                 # pos_emb (resident)
        pl.BlockSpec((kt, kt), lambda b, qi: (0, 0)),               # rev-cumsum op
    ]
    operands = [query, key, val, log_mask, pe2, rc]
    if nt > 1:
        in_specs.append(pl.BlockSpec((nt, nt), lambda b, qi: (0, 0)))  # suffix-sum op
        operands.append(sfx)

    return pl.pallas_call(
        kernel,
        out_shape=jax.ShapeDtypeStruct((B, S, D), jnp.float32),
        grid_spec=pltpu.PrefetchScalarGridSpec(
            num_scalar_prefetch=0,
            grid=(B // block_b, S // tq),
            in_specs=in_specs,
            out_specs=pl.BlockSpec((block_b, tq, D), lambda b, qi: (b, qi, 0)),
        ),
        compiler_params=pltpu.CompilerParams(
            dimension_semantics=("parallel", "parallel"),
            vmem_limit_bytes=vmem_limit),
    )(*operands)


def self_attn_reference(query, key, val, mask, pos_emb, npos_max):
    """Pure-JAX mirror of the PyTorch forward, for correctness checking."""
    D = query.shape[-1]
    attn_logits = jnp.einsum("bsd,btd->bst", query, key) / math.sqrt(D)
    attn_logits = attn_logits + jnp.log(mask)
    gates = jax.nn.sigmoid(attn_logits)
    pos = jnp.flip(jnp.cumsum(jnp.flip(gates, -1), axis=-1), -1)
    pos = jnp.minimum(pos, npos_max - 1)
    pos_ceil = jnp.ceil(pos).astype(jnp.int32)
    pos_floor = jnp.floor(pos).astype(jnp.int32)
    logits_int = jnp.einsum("bsd,zdp->bsp", query, pos_emb)
    logits_ceil = jnp.take_along_axis(logits_int, pos_ceil, axis=-1)
    logits_floor = jnp.take_along_axis(logits_int, pos_floor, axis=-1)
    w = pos - pos_floor
    cope = logits_ceil * w + logits_floor * (1.0 - w)
    attn_logits = attn_logits + cope
    attn = jax.nn.softmax(attn_logits, axis=-1)
    return jnp.einsum("bst,btd->bsd", attn, val)


if __name__ == "__main__":
    B, S, D, NPOS = 2, 16, 32, 8

    key0 = jax.random.PRNGKey(0)
    kq, kk, kv, kp = jax.random.split(key0, 4)

    query = jax.random.normal(kq, (B, S, D), dtype=jnp.float32)
    key_ = jax.random.normal(kk, (B, S, D), dtype=jnp.float32)
    val = jax.random.normal(kv, (B, S, D), dtype=jnp.float32)
    # Shared multiplicative causal mask (module adds its log to the logits).
    mask2d = jnp.tril(jnp.ones((S, S), jnp.float32))
    pos_emb = 0.02 * jax.random.normal(kp, (1, D, NPOS), dtype=jnp.float32)

    ref = jax.block_until_ready(
        self_attn_reference(query, key_, val, mask2d[None], pos_emb, NPOS))

    # 1) Production path: bf16 MXU inputs, resident shared mask (loose tolerance).
    out_bf16 = jax.block_until_ready(
        self_attn_pallas(query, key_, val, mask2d, pos_emb, NPOS))
    np.testing.assert_allclose(np.asarray(out_bf16), np.asarray(ref),
                               rtol=3e-2, atol=3e-2)

    # 2) f32 MXU path (tight tolerance; only the approx softmax reciprocal differs).
    out_f32 = jax.block_until_ready(
        self_attn_pallas(query, key_, val, mask2d, pos_emb, NPOS,
                         matmul_dtype=jnp.float32))
    np.testing.assert_allclose(np.asarray(out_f32), np.asarray(ref),
                               rtol=2e-3, atol=2e-3)

    # 3) Structural test: per-batch streamed mask, blocked reverse cumsum (nt=2)
    #    and multiple query tiles (small shapes, forced tiles).
    S2 = 32
    kq2, kk2, kv2 = jax.random.split(jax.random.PRNGKey(1), 3)
    query2 = jax.random.normal(kq2, (B, S2, D), dtype=jnp.float32)
    key2 = jax.random.normal(kk2, (B, S2, D), dtype=jnp.float32)
    val2 = jax.random.normal(kv2, (B, S2, D), dtype=jnp.float32)
    mask_b = jnp.broadcast_to(jnp.tril(jnp.ones((S2, S2), jnp.float32)), (B, S2, S2))
    ref2 = jax.block_until_ready(
        self_attn_reference(query2, key2, val2, mask_b, pos_emb, NPOS))
    out2 = jax.block_until_ready(
        self_attn_pallas(query2, key2, val2, mask_b, pos_emb, NPOS,
                         query_tile=16, key_tile=16, matmul_dtype=jnp.float32))
    np.testing.assert_allclose(np.asarray(out2), np.asarray(ref2),
                               rtol=2e-3, atol=2e-3)

    print("KERNEL_OK")
</pallas_src>

<mosaic_0001>
module attributes {stable_mosaic.version = 11 : i64} {
  func.func @kernel(%arg0: i32, %arg1: i32, %arg2: memref<1x16x32xf32, #tpu.memory_space<vmem>>, %arg3: memref<1x16x32xf32, #tpu.memory_space<vmem>>, %arg4: memref<1x16x32xf32, #tpu.memory_space<vmem>>, %arg5: memref<16x16xf32, #tpu.memory_space<vmem>>, %arg6: memref<32x8xf32, #tpu.memory_space<vmem>>, %arg7: memref<16x16xf32, #tpu.memory_space<vmem>>, %arg8: memref<1x16x32xf32, #tpu.memory_space<vmem>>) attributes {dimension_semantics = [#tpu.dimension_semantics<parallel>, #tpu.dimension_semantics<parallel>], iteration_bounds = array<i64: 2, 1>, scalar_prefetch = 0 : i64, scratch_operands = 0 : i64, tpu.core_type = #tpu.core_type<tc>, window_params = [{transform_indices = @transform_0, window_bounds = array<i64: 1, 16, 32>}, {transform_indices = @transform_1, window_bounds = array<i64: 1, 16, 32>}, {transform_indices = @transform_2, window_bounds = array<i64: 1, 16, 32>}, {transform_indices = @transform_3, window_bounds = array<i64: 16, 16>}, {pipeline_mode = #tpu.pipeline_mode<synchronous>, transform_indices = @transform_4, window_bounds = array<i64: 32, 8>}, {pipeline_mode = #tpu.pipeline_mode<synchronous>, transform_indices = @transform_5, window_bounds = array<i64: 16, 16>}, {transform_indices = @transform_6, window_bounds = array<i64: 1, 16, 32>}]} {
    %c0 = arith.constant 0 : index
    %c0_0 = arith.constant 0 : index
    %c0_1 = arith.constant 0 : index
    %0 = vector.load %arg2[%c0, %c0_0, %c0_1] : memref<1x16x32xf32, #tpu.memory_space<vmem>>, vector<1x16x32xf32>
    %c0_2 = arith.constant 0 : index
    %c0_3 = arith.constant 0 : index
    %c0_4 = arith.constant 0 : index
    %1 = vector.load %arg3[%c0_2, %c0_3, %c0_4] : memref<1x16x32xf32, #tpu.memory_space<vmem>>, vector<1x16x32xf32>
    %c0_5 = arith.constant 0 : index
    %c0_6 = arith.constant 0 : index
    %c0_7 = arith.constant 0 : index
    %2 = vector.load %arg4[%c0_5, %c0_6, %c0_7] : memref<1x16x32xf32, #tpu.memory_space<vmem>>, vector<1x16x32xf32>
    %cst = arith.constant 0.176776692 : f32
    %3 = vector.broadcast %cst : f32 to vector<1x16x32xf32>
    %4 = arith.mulf %1, %3 : vector<1x16x32xf32>
    %5 = arith.truncf %4 : vector<1x16x32xf32> to vector<1x16x32xbf16>
    %6 = arith.truncf %0 : vector<1x16x32xf32> to vector<1x16x32xbf16>
    "tpu.trace_start"() <{level = 10 : i32, message = "bqd,bkd->bqk"}> : () -> ()
    %cst_8 = arith.constant dense<0.000000e+00> : vector<1x16x16xf32>
    %7 = tpu.matmul %6, %5, %cst_8 {dimension_numbers = #tpu.dot_dimension_numbers<[2], [2], [1], [1], [0, 0, 0, 1, 1, 1], [0], [0]>} : vector<1x16x32xbf16>, vector<1x16x32xbf16>, vector<1x16x16xf32> -> vector<1x16x16xf32>
    "tpu.trace_stop"() : () -> ()
    %c0_9 = arith.constant 0 : index
    %c0_10 = arith.constant 0 : index
    %8 = vector.load %arg5[%c0_9, %c0_10] : memref<16x16xf32, #tpu.memory_space<vmem>>, vector<16x16xf32>
    %9 = vector.shape_cast %8 : vector<16x16xf32> to vector<1x16x16xf32>
    %10 = arith.addf %7, %9 : vector<1x16x16xf32>
    %11 = vector.shape_cast %10 : vector<1x16x16xf32> to vector<16x16xf32>
    %12 = arith.negf %11 : vector<16x16xf32>
    %13 = math.exp %12 : vector<16x16xf32>
    %cst_11 = arith.constant 1.000000e+00 : f32
    %14 = vector.broadcast %cst_11 : f32 to vector<16x16xf32>
    %15 = arith.addf %14, %13 : vector<16x16xf32>
    %16 = arith.divf %14, %15 : vector<16x16xf32>
    %c0_12 = arith.constant 0 : index
    %c0_13 = arith.constant 0 : index
    %17 = vector.load %arg7[%c0_12, %c0_13] : memref<16x16xf32, #tpu.memory_space<vmem>>, vector<16x16xf32>
    %cst_14 = arith.constant dense<0.000000e+00> : vector<16x16xf32>
    %18 = tpu.matmul %16, %17, %cst_14 {dimension_numbers = #tpu.dot_dimension_numbers<[1], [0], [0], [1], [0, 0, 1, 1], [], []>} : vector<16x16xf32>, vector<16x16xf32>, vector<16x16xf32> -> vector<16x16xf32>
    %cst_15 = arith.constant 7.000000e+00 : f32
    %19 = vector.broadcast %cst_15 : f32 to vector<16x16xf32>
    %20 = arith.minimumf %18, %19 : vector<16x16xf32>
    %21 = vector.shape_cast %0 : vector<1x16x32xf32> to vector<16x32xf32>
    %c0_16 = arith.constant 0 : index
    %c0_17 = arith.constant 0 : index
    %22 = vector.load %arg6[%c0_16, %c0_17] : memref<32x8xf32, #tpu.memory_space<vmem>>, vector<32x8xf32>
    %cst_18 = arith.constant dense<0.000000e+00> : vector<16x8xf32>
    %23 = tpu.matmul %21, %22, %cst_18 {dimension_numbers = #tpu.dot_dimension_numbers<[1], [0], [0], [1], [0, 0, 1, 1], [], []>} : vector<16x32xf32>, vector<32x8xf32>, vector<16x8xf32> -> vector<16x8xf32>
    %24 = math.floor %20 : vector<16x16xf32>
    %25 = arith.subf %20, %24 : vector<16x16xf32>
    %cst_19 = arith.constant 0.000000e+00 : f32
    %26 = vector.broadcast %cst_19 : f32 to vector<16x16xf32>
    %cst_20 = arith.constant 0.000000e+00 : f32
    %27 = vector.broadcast %cst_20 : f32 to vector<16x16xf32>
    %cst_21 = arith.constant 0.000000e+00 : f32
    %28 = vector.broadcast %cst_21 : f32 to vector<16x16xf32>
    %29 = arith.cmpf oeq, %24, %28 : vector<16x16xf32>
    %30 = vector.extract_strided_slice %23 {offsets = [0, 0], sizes = [16, 1], strides = [1, 1]} : vector<16x8xf32> to vector<16x1xf32>
    %31 = vector.shape_cast %30 : vector<16x1xf32> to vector<16x1xf32>
    %32 = vector.broadcast %31 : vector<16x1xf32> to vector<16x16xf32>
    %33 = arith.select %29, %32, %26 : vector<16x16xi1>, vector<16x16xf32>
    %34 = vector.extract_strided_slice %23 {offsets = [0, 1], sizes = [16, 1], strides = [1, 1]} : vector<16x8xf32> to vector<16x1xf32>
    %35 = vector.shape_cast %34 : vector<16x1xf32> to vector<16x1xf32>
    %36 = vector.broadcast %35 : vector<16x1xf32> to vector<16x16xf32>
    %37 = arith.select %29, %36, %27 : vector<16x16xi1>, vector<16x16xf32>
    %cst_22 = arith.constant 1.000000e+00 : f32
    %38 = vector.broadcast %cst_22 : f32 to vector<16x16xf32>
    %39 = arith.cmpf oeq, %24, %38 : vector<16x16xf32>
    %40 = vector.extract_strided_slice %23 {offsets = [0, 1], sizes = [16, 1], strides = [1, 1]} : vector<16x8xf32> to vector<16x1xf32>
    %41 = vector.shape_cast %40 : vector<16x1xf32> to vector<16x1xf32>
    %42 = vector.broadcast %41 : vector<16x1xf32> to vector<16x16xf32>
    %43 = arith.select %39, %42, %33 : vector<16x16xi1>, vector<16x16xf32>
    %44 = vector.extract_strided_slice %23 {offsets = [0, 2], sizes = [16, 1], strides = [1, 1]} : vector<16x8xf32> to vector<16x1xf32>
    %45 = vector.shape_cast %44 : vector<16x1xf32> to vector<16x1xf32>
    %46 = vector.broadcast %45 : vector<16x1xf32> to vector<16x16xf32>
    %47 = arith.select %39, %46, %37 : vector<16x16xi1>, vector<16x16xf32>
    %cst_23 = arith.constant 2.000000e+00 : f32
    %48 = vector.broadcast %cst_23 : f32 to vector<16x16xf32>
    %49 = arith.cmpf oeq, %24, %48 : vector<16x16xf32>
    %50 = vector.extract_strided_slice %23 {offsets = [0, 2], sizes = [16, 1], strides = [1, 1]} : vector<16x8xf32> to vector<16x1xf32>
    %51 = vector.shape_cast %50 : vector<16x1xf32> to vector<16x1xf32>
    %52 = vector.broadcast %51 : vector<16x1xf32> to vector<16x16xf32>
    %53 = arith.select %49, %52, %43 : vector<16x16xi1>, vector<16x16xf32>
    %54 = vector.extract_strided_slice %23 {offsets = [0, 3], sizes = [16, 1], strides = [1, 1]} : vector<16x8xf32> to vector<16x1xf32>
    %55 = vector.shape_cast %54 : vector<16x1xf32> to vector<16x1xf32>
    %56 = vector.broadcast %55 : vector<16x1xf32> to vector<16x16xf32>
    %57 = arith.select %49, %56, %47 : vector<16x16xi1>, vector<16x16xf32>
    %cst_24 = arith.constant 3.000000e+00 : f32
    %58 = vector.broadcast %cst_24 : f32 to vector<16x16xf32>
    %59 = arith.cmpf oeq, %24, %58 : vector<16x16xf32>
    %60 = vector.extract_strided_slice %23 {offsets = [0, 3], sizes = [16, 1], strides = [1, 1]} : vector<16x8xf32> to vector<16x1xf32>
    %61 = vector.shape_cast %60 : vector<16x1xf32> to vector<16x1xf32>
    %62 = vector.broadcast %61 : vector<16x1xf32> to vector<16x16xf32>
    %63 = arith.select %59, %62, %53 : vector<16x16xi1>, vector<16x16xf32>
    %64 = vector.extract_strided_slice %23 {offsets = [0, 4], sizes = [16, 1], strides = [1, 1]} : vector<16x8xf32> to vector<16x1xf32>
    %65 = vector.shape_cast %64 : vector<16x1xf32> to vector<16x1xf32>
    %66 = vector.broadcast %65 : vector<16x1xf32> to vector<16x16xf32>
    %67 = arith.select %59, %66, %57 : vector<16x16xi1>, vector<16x16xf32>
    %cst_25 = arith.constant 4.000000e+00 : f32
    %68 = vector.broadcast %cst_25 : f32 to vector<16x16xf32>
    %69 = arith.cmpf oeq, %24, %68 : vector<16x16xf32>
    %70 = vector.extract_strided_slice %23 {offsets = [0, 4], sizes = [16, 1], strides = [1, 1]} : vector<16x8xf32> to vector<16x1xf32>
    %71 = vector.shape_cast %70 : vector<16x1xf32> to vector<16x1xf32>
    %72 = vector.broadcast %71 : vector<16x1xf32> to vector<16x16xf32>
    %73 = arith.select %69, %72, %63 : vector<16x16xi1>, vector<16x16xf32>
    %74 = vector.extract_strided_slice %23 {offsets = [0, 5], sizes = [16, 1], strides = [1, 1]} : vector<16x8xf32> to vector<16x1xf32>
    %75 = vector.shape_cast %74 : vector<16x1xf32> to vector<16x1xf32>
    %76 = vector.broadcast %75 : vector<16x1xf32> to vector<16x16xf32>
    %77 = arith.select %69, %76, %67 : vector<16x16xi1>, vector<16x16xf32>
    %cst_26 = arith.constant 5.000000e+00 : f32
    %78 = vector.broadcast %cst_26 : f32 to vector<16x16xf32>
    %79 = arith.cmpf oeq, %24, %78 : vector<16x16xf32>
    %80 = vector.extract_strided_slice %23 {offsets = [0, 5], sizes = [16, 1], strides = [1, 1]} : vector<16x8xf32> to vector<16x1xf32>
    %81 = vector.shape_cast %80 : vector<16x1xf32> to vector<16x1xf32>
    %82 = vector.broadcast %81 : vector<16x1xf32> to vector<16x16xf32>
    %83 = arith.select %79, %82, %73 : vector<16x16xi1>, vector<16x16xf32>
    %84 = vector.extract_strided_slice %23 {offsets = [0, 6], sizes = [16, 1], strides = [1, 1]} : vector<16x8xf32> to vector<16x1xf32>
    %85 = vector.shape_cast %84 : vector<16x1xf32> to vector<16x1xf32>
    %86 = vector.broadcast %85 : vector<16x1xf32> to vector<16x16xf32>
    %87 = arith.select %79, %86, %77 : vector<16x16xi1>, vector<16x16xf32>
    %cst_27 = arith.constant 6.000000e+00 : f32
    %88 = vector.broadcast %cst_27 : f32 to vector<16x16xf32>
    %89 = arith.cmpf oeq, %24, %88 : vector<16x16xf32>
    %90 = vector.extract_strided_slice %23 {offsets = [0, 6], sizes = [16, 1], strides = [1, 1]} : vector<16x8xf32> to vector<16x1xf32>
    %91 = vector.shape_cast %90 : vector<16x1xf32> to vector<16x1xf32>
    %92 = vector.broadcast %91 : vector<16x1xf32> to vector<16x16xf32>
    %93 = arith.select %89, %92, %83 : vector<16x16xi1>, vector<16x16xf32>
    %94 = vector.extract_strided_slice %23 {offsets = [0, 7], sizes = [16, 1], strides = [1, 1]} : vector<16x8xf32> to vector<16x1xf32>
    %95 = vector.shape_cast %94 : vector<16x1xf32> to vector<16x1xf32>
    %96 = vector.broadcast %95 : vector<16x1xf32> to vector<16x16xf32>
    %97 = arith.select %89, %96, %87 : vector<16x16xi1>, vector<16x16xf32>
    %cst_28 = arith.constant 7.000000e+00 : f32
    %98 = vector.broadcast %cst_28 : f32 to vector<16x16xf32>
    %99 = arith.cmpf oeq, %24, %98 : vector<16x16xf32>
    %100 = vector.extract_strided_slice %23 {offsets = [0, 7], sizes = [16, 1], strides = [1, 1]} : vector<16x8xf32> to vector<16x1xf32>
    %101 = vector.shape_cast %100 : vector<16x1xf32> to vector<16x1xf32>
    %102 = vector.broadcast %101 : vector<16x1xf32> to vector<16x16xf32>
    %103 = arith.select %99, %102, %93 : vector<16x16xi1>, vector<16x16xf32>
    %104 = vector.extract_strided_slice %23 {offsets = [0, 7], sizes = [16, 1], strides = [1, 1]} : vector<16x8xf32> to vector<16x1xf32>
    %105 = vector.shape_cast %104 : vector<16x1xf32> to vector<16x1xf32>
    %106 = vector.broadcast %105 : vector<16x1xf32> to vector<16x16xf32>
    %107 = arith.select %99, %106, %97 : vector<16x16xi1>, vector<16x16xf32>
    %108 = arith.subf %107, %103 : vector<16x16xf32>
    %109 = arith.mulf %25, %108 : vector<16x16xf32>
    %110 = arith.addf %103, %109 : vector<16x16xf32>
    %111 = arith.addf %11, %110 : vector<16x16xf32>
    %cst_29 = arith.constant dense<0xFF800000> : vector<16xf32>
    %112 = vector.multi_reduction <maximumf>, %111, %cst_29 [1] : vector<16x16xf32> to vector<16xf32>
    %113 = vector.shape_cast %112 : vector<16xf32> to vector<16x1xf32>
    %114 = vector.broadcast %113 : vector<16x1xf32> to vector<16x16xf32>
    %115 = arith.subf %111, %114 : vector<16x16xf32>
    %116 = math.exp %115 : vector<16x16xf32>
    %cst_30 = arith.constant dense<0.000000e+00> : vector<16xf32>
    %117 = vector.multi_reduction <add>, %116, %cst_30 [1] : vector<16x16xf32> to vector<16xf32>
    %118 = vector.shape_cast %117 : vector<16xf32> to vector<16x1xf32>
    %119 = vector.shape_cast %116 : vector<16x16xf32> to vector<1x16x16xf32>
    %120 = arith.truncf %119 : vector<1x16x16xf32> to vector<1x16x16xbf16>
    %121 = arith.truncf %2 : vector<1x16x32xf32> to vector<1x16x32xbf16>
    "tpu.trace_start"() <{level = 10 : i32, message = "bqk,bkd->bqd"}> : () -> ()
    %cst_31 = arith.constant dense<0.000000e+00> : vector<1x16x32xf32>
    %122 = tpu.matmul %120, %121, %cst_31 {dimension_numbers = #tpu.dot_dimension_numbers<[2], [1], [1], [2], [0, 0, 0, 1, 1, 2], [0], [0]>} : vector<1x16x16xbf16>, vector<1x16x32xbf16>, vector<1x16x32xf32> -> vector<1x16x32xf32>
    "tpu.trace_stop"() : () -> ()
    %123 = tpu.reciprocal %118 {approx = true} : vector<16x1xf32> -> vector<16x1xf32>
    %124 = vector.shape_cast %123 : vector<16x1xf32> to vector<1x16x1xf32>
    %125 = vector.broadcast %124 : vector<1x16x1xf32> to vector<1x16x32xf32>
    %126 = arith.mulf %122, %125 : vector<1x16x32xf32>
    %c0_32 = arith.constant 0 : index
    %c0_33 = arith.constant 0 : index
    %c0_34 = arith.constant 0 : index
    %127 = vector.load %arg8[%c0_32, %c0_33, %c0_34] : memref<1x16x32xf32, #tpu.memory_space<vmem>>, vector<1x16x32xf32>
    tpu.vector_store %arg8[%c0_32, %c0_33, %c0_34], %126 {strides = array<i32>} : memref<1x16x32xf32, #tpu.memory_space<vmem>>, vector<1x16x32xf32>,
    return
  }
  func.func @transform_0(%arg0: i32, %arg1: i32) -> (i32, i32, i32) {
    %c0_i32 = arith.constant 0 : i32
    %c0_i32_0 = arith.constant 0 : i32
    return %arg0, %arg1, %c0_i32 : i32, i32, i32
  }
  func.func @transform_1(%arg0: i32, %arg1: i32) -> (i32, i32, i32) {
    %c0_i32 = arith.constant 0 : i32
    %c0_i32_0 = arith.constant 0 : i32
    %c0_i32_1 = arith.constant 0 : i32
    return %arg0, %c0_i32, %c0_i32_0 : i32, i32, i32
  }
  func.func @transform_2(%arg0: i32, %arg1: i32) -> (i32, i32, i32) {
    %c0_i32 = arith.constant 0 : i32
    %c0_i32_0 = arith.constant 0 : i32
    %c0_i32_1 = arith.constant 0 : i32
    return %arg0, %c0_i32, %c0_i32_0 : i32, i32, i32
  }
  func.func @transform_3(%arg0: i32, %arg1: i32) -> (i32, i32) {
    %c0_i32 = arith.constant 0 : i32
    %c0_i32_0 = arith.constant 0 : i32
    return %arg1, %c0_i32 : i32, i32
  }
  func.func @transform_4(%arg0: i32, %arg1: i32) -> (i32, i32) {
    %c0_i32 = arith.constant 0 : i32
    %c0_i32_0 = arith.constant 0 : i32
    %c0_i32_1 = arith.constant 0 : i32
    return %c0_i32, %c0_i32_0 : i32, i32
  }
  func.func @transform_5(%arg0: i32, %arg1: i32) -> (i32, i32) {
    %c0_i32 = arith.constant 0 : i32
    %c0_i32_0 = arith.constant 0 : i32
    %c0_i32_1 = arith.constant 0 : i32
    return %c0_i32, %c0_i32_0 : i32, i32
  }
  func.func @transform_6(%arg0: i32, %arg1: i32) -> (i32, i32, i32) {
    %c0_i32 = arith.constant 0 : i32
    %c0_i32_0 = arith.constant 0 : i32
    return %arg0, %arg1, %c0_i32 : i32, i32, i32
  }
}

</mosaic_0001>

<llo_original>
// kernel: tpu_custom_call.1
$region0: #{tpu_custom_call.1}
  #allocation0 [shape = 'u32[]', space=smem, size = 0x4, offset = 0x4, fixed_abs, tag = 'smem constant byte address 0x4 - core index']
  #allocation1 [shape = 'u32[144,128]{1,0:T(1,128)}', space=vmem, size = 0x12000, scoped, tag = 'internal scratch']
  %s0 = inlined_call_operand.vmem [shape: f32[2,16,32], index: 0, kind: input, shape index: {}]
  %s1 = inlined_call_operand.hbm [shape: f32[2,16,32], index: 1, kind: input, shape index: {}]
  %s2 = inlined_call_operand.hbm [shape: f32[2,16,32], index: 2, kind: input, shape index: {}]
  %s3 = inlined_call_operand.vmem [shape: f32[16,16], index: 3, kind: input, shape index: {}]
  %s4 = inlined_call_operand.vmem [shape: f32[32,8], index: 4, kind: input, shape index: {}]
  %s5 = inlined_call_operand.hbm [shape: f32[16,16], index: 5, kind: input, shape index: {}]
  %s6 = inlined_call_operand.hbm [shape: f32[2,16,32], index: 6, kind: output, shape index: {}]
  %s7 = sld [smem:[#allocation0]]
  $region69: #{tpu_custom_call.1} parent=0
    _
  %s9 = ssub.s32 1, %s7
  %s10 = scalar_select 0, %s9, %s7
  $region1: #{tpu_custom_call.1} parent=0
    #allocation2 [shape = 'u8[16384]{0}', space=vmem, size = 0x4000, scoped, tag = 'input window, operand 1']
    #allocation3 [shape = 's32[2]{0}', space=sflag, size = 0x8, scoped, tag = 'scoped memory for tpu_custom_call.1']
    #allocation4 [shape = 's32[2]{0}', space=sflag, size = 0x8, scoped, tag = 'scoped memory for tpu_custom_call.1']
    #allocation5 [shape = 'u8[16384]{0}', space=vmem, size = 0x4000, scoped, tag = 'input window, operand 2']
    #allocation6 [shape = 's32[2]{0}', space=sflag, size = 0x8, scoped, tag = 'scoped memory for tpu_custom_call.1']
    #allocation7 [shape = 'u8[8192]{0}', space=vmem, size = 0x2000, scoped, tag = 'input window, operand 5, single buffered']
    #allocation8 [shape = 'u8[16384]{0}', space=vmem, size = 0x4000, scoped, tag = 'output window, operand 0']
    %11 = vsyncpa [#allocation3], 0
    %s12 = scalar_lea.sflag [#allocation3], 1
    %13 = vsyncpa %s12, 0
    %14 = vsyncpa [#allocation6], 0
    %s15 = scalar_lea.sflag [#allocation6], 1
    %16 = vsyncpa %s15, 0
    %17 = vsyncpa [#allocation4], 0
    %s18 = scalar_lea.sflag [#allocation4], 1
    %19 = vsyncpa %s18, 0
    loop: start=0, step=1, limit=4
    $region2: #{tpu_custom_call.1} parent=1 // loop_pre_header
      _
    $region3: #{tpu_custom_call.1} parent=1 // loop_header
      %s21 = sphi 0, %s25
      %p22 = scmp.ge.s32.totalorder %s21, 4
      %s28 = sphi 0, %s40
      %s29 = sphi 0, %s36
      %s30 = sphi 0, %s28
      %s31 = sphi 0, %s29
      %s32 = sphi 0, %s30
      %s33 = sphi 0, %s31
      %s45 = sphi 0, %s47
      %s48 = sphi 0, %s45
      %s49 = sphi 0, %s48
      %s65 = sphi 0, %s49
      %s71 = sphi 0, %s73
      %s74 = sphi 0, %s71
      %s75 = sphi 0, %s74
      %s91 = sphi 0, %s75
      %s97 = sphi 0, %s99
      %s100 = sphi 0, %s97
      %s101 = sphi 0, %s100
      %s117 = sphi 0, %s101
      %s123 = sphi 0, %s125
      %s126 = sphi 0, %s123
      %s127 = sphi 0, %s126
      %s143 = sphi 0, %s127
      %s147 = sphi 0, %s147
      %s149 = sphi 0, %s147
      %s150 = sphi 0, %s149
      %s164 = sphi 0, %s150
      %s168 = sphi 0, %s168
      %s170 = sphi 0, %s168
      %s171 = sphi 0, %s170
      %s185 = sphi 0, %s171
      %s193 = sphi 0, %s195
      %s196 = sphi 0, %s193
      %s197 = sphi 0, %s196
      %s213 = sphi 0, %s197
    $region4: #{tpu_custom_call.1} parent=1 // loop_header_branch
      %24 = sbr.rel (%p22) target = $region8
    $region5: #{tpu_custom_call.1} parent=1 // loop_body
      %s26 = ssub.s32 %s21, 1
      %s27 = ssub.s32 %s21, 2
      %s34 = sadd.s32 1, %s29
      %p35 = scmp.ge.s32.totalorder %s34, 1
      %s36 = scalar_select %p35, 0, %s34
      %s37 = sadd.s32 1, %s28
      %s38 = scalar_select %p35, %s37, %s28
      %p39 = scmp.ge.s32.totalorder %s38, 2
      %s40 = scalar_select %p39, 0, %s38
      %s41 = ssub.s32 %s28, %s40
      %s42 = ssub.s32 %s29, %s36
      %s43 = sor.u32 %s41, %s42
      %p44 = scmp.eq.s32.totalorder %s43, 0
      %s46 = sadd.s32 %s45, 1
      %s47 = scalar_select %p44, %s45, %s46
      %p50 = pneg %p44
      %p51 = scmp.eq.s32.totalorder %s21, 1
      %p52 = por %p50, %p51
      %p53 = scmp.ne.s32.totalorder %s45, %s48
      %p54 = scmp.eq.s32.totalorder %s21, 0
      %p55 = por %p53, %p54
      %p56 = scmp.ne.s32.totalorder %s45, %s48
      %p57 = scmp.eq.s32.totalorder %s26, 1
      %p58 = por %p56, %p57
      %p59 = scmp.ne.s32.totalorder %s48, %s49
      %p60 = scmp.eq.s32.totalorder %s26, 0
      %p61 = por %p59, %p60
      %p62 = scmp.ne.s32.totalorder %s48, %s49
      %p63 = scmp.eq.s32.totalorder %s27, 1
      %p64 = por %p62, %p63
      %p66 = scmp.ne.s32.totalorder %s49, %s65
      %p67 = scmp.eq.s32.totalorder %s27, 0
      %p68 = por %p66, %p67
      %s69 = ssub.s32 %s28, %s40
      %p70 = scmp.eq.s32.totalorder %s69, 0
      %s72 = sadd.s32 %s71, 1
      %s73 = scalar_select %p70, %s71, %s72
      %p76 = pneg %p70
      %p77 = scmp.eq.s32.totalorder %s21, 1
      %p78 = por %p76, %p77
      %p79 = scmp.ne.s32.totalorder %s71, %s74
      %p80 = scmp.eq.s32.totalorder %s21, 0
      %p81 = por %p79, %p80
      %p82 = scmp.ne.s32.totalorder %s71, %s74
      %p83 = scmp.eq.s32.totalorder %s26, 1
      %p84 = por %p82, %p83
      %p85 = scmp.ne.s32.totalorder %s74, %s75
      %p86 = scmp.eq.s32.totalorder %s26, 0
      %p87 = por %p85, %p86
      %p88 = scmp.ne.s32.totalorder %s74, %s75
      %p89 = scmp.eq.s32.totalorder %s27, 1
      %p90 = por %p88, %p89
      %p92 = scmp.ne.s32.totalorder %s75, %s91
      %p93 = scmp.eq.s32.totalorder %s27, 0
      %p94 = por %p92, %p93
      %s95 = ssub.s32 %s28, %s40
      %p96 = scmp.eq.s32.totalorder %s95, 0
      %s98 = sadd.s32 %s97, 1
      %s99 = scalar_select %p96, %s97, %s98
      %p102 = pneg %p96
      %p103 = scmp.eq.s32.totalorder %s21, 1
      %p104 = por %p102, %p103
      %p105 = scmp.ne.s32.totalorder %s97, %s100
      %p106 = scmp.eq.s32.totalorder %s21, 0
      %p107 = por %p105, %p106
      %p108 = scmp.ne.s32.totalorder %s97, %s100
      %p109 = scmp.eq.s32.totalorder %s26, 1
      %p110 = por %p108, %p109
      %p111 = scmp.ne.s32.totalorder %s100, %s101
      %p112 = scmp.eq.s32.totalorder %s26, 0
      %p113 = por %p111, %p112
      %p114 = scmp.ne.s32.totalorder %s100, %s101
      %p115 = scmp.eq.s32.totalorder %s27, 1
      %p116 = por %p114, %p115
      %p118 = scmp.ne.s32.totalorder %s101, %s117
      %p119 = scmp.eq.s32.totalorder %s27, 0
      %p120 = por %p118, %p119
      %s121 = ssub.s32 %s29, %s36
      %p122 = scmp.eq.s32.totalorder %s121, 0
      %s124 = sadd.s32 %s123, 1
      %s125 = scalar_select %p122, %s123, %s124
      %p128 = pneg %p122
      %p129 = scmp.eq.s32.totalorder %s21, 1
      %p130 = por %p128, %p129
      %p131 = scmp.ne.s32.totalorder %s123, %s126
      %p132 = scmp.eq.s32.totalorder %s21, 0
      %p133 = por %p131, %p132
      %p134 = scmp.ne.s32.totalorder %s123, %s126
      %p135 = scmp.eq.s32.totalorder %s26, 1
      %p136 = por %p134, %p135
      %p137 = scmp.ne.s32.totalorder %s126, %s127
      %p138 = scmp.eq.s32.totalorder %s26, 0
      %p139 = por %p137, %p138
      %p140 = scmp.ne.s32.totalorder %s126, %s127
      %p141 = scmp.eq.s32.totalorder %s27, 1
      %p142 = por %p140, %p141
      %p144 = scmp.ne.s32.totalorder %s127, %s143
      %p145 = scmp.eq.s32.totalorder %s27, 0
      %p146 = por %p144, %p145
      %s148 = sadd.s32 %s147, 1
      %p151 = scmp.eq.s32.totalorder %s21, 1
      %p152 = scmp.ne.s32.totalorder %s147, %s149
      %p153 = scmp.eq.s32.totalorder %s21, 0
      %p154 = por %p152, %p153
      %p155 = scmp.ne.s32.totalorder %s147, %s149
      %p156 = scmp.eq.s32.totalorder %s26, 1
      %p157 = por %p155, %p156
      %p158 = scmp.ne.s32.totalorder %s149, %s150
      %p159 = scmp.eq.s32.totalorder %s26, 0
      %p160 = por %p158, %p159
      %p161 = scmp.ne.s32.totalorder %s149, %s150
      %p162 = scmp.eq.s32.totalorder %s27, 1
      %p163 = por %p161, %p162
      %p165 = scmp.ne.s32.totalorder %s150, %s164
      %p166 = scmp.eq.s32.totalorder %s27, 0
      %p167 = por %p165, %p166
      %s169 = sadd.s32 %s168, 1
      %p172 = scmp.eq.s32.totalorder %s21, 1
      %p173 = scmp.ne.s32.totalorder %s168, %s170
      %p174 = scmp.eq.s32.totalorder %s21, 0
      %p175 = por %p173, %p174
      %p176 = scmp.ne.s32.totalorder %s168, %s170
      %p177 = scmp.eq.s32.totalorder %s26, 1
      %p178 = por %p176, %p177
      %p179 = scmp.ne.s32.totalorder %s170, %s171
      %p180 = scmp.eq.s32.totalorder %s26, 0
      %p181 = por %p179, %p180
      %p182 = scmp.ne.s32.totalorder %s170, %s171
      %p183 = scmp.eq.s32.totalorder %s27, 1
      %p184 = por %p182, %p183
      %p186 = scmp.ne.s32.totalorder %s171, %s185
      %p187 = scmp.eq.s32.totalorder %s27, 0
      %p188 = por %p186, %p187
      %s189 = ssub.s32 %s28, %s40
      %s190 = ssub.s32 %s29, %s36
      %s191 = sor.u32 %s189, %s190
      %p192 = scmp.eq.s32.totalorder %s191, 0
      %s194 = sadd.s32 %s193, 1
      %s195 = scalar_select %p192, %s193, %s194
      %p198 = pneg %p192
      %p199 = scmp.eq.s32.totalorder %s21, 1
      %p200 = por %p198, %p199
      %p201 = scmp.ne.s32.totalorder %s193, %s196
      %p202 = scmp.eq.s32.totalorder %s21, 0
      %p203 = por %p201, %p202
      %p204 = scmp.ne.s32.totalorder %s193, %s196
      %p205 = scmp.eq.s32.totalorder %s26, 1
      %p206 = por %p204, %p205
      %p207 = scmp.ne.s32.totalorder %s196, %s197
      %p208 = scmp.eq.s32.totalorder %s26, 0
      %p209 = por %p207, %p208
      %p210 = scmp.ne.s32.totalorder %s196, %s197
      %p211 = scmp.eq.s32.totalorder %s27, 1
      %p212 = por %p210, %p211
      %p214 = scmp.ne.s32.totalorder %s197, %s213
      %p215 = scmp.eq.s32.totalorder %s27, 0
      %p216 = por %p214, %p215
      %p217 = scmp.le.s32.totalorder 1, %s21
      %p218 = scmp.lt.s32.totalorder %s21, 3
      %p219 = pnand %p217, %p218
      %p220 = pneg %p219
      // Predicated region
      $region9: #{tpu_custom_call.1} parent=5 // pred_check
        _
      $region10: #{tpu_custom_call.1} parent=5 // pred_check_branch
        %222 = sbr.rel (%p219) target = $region12
      $region11: #{tpu_custom_call.1} parent=5 // pred_region
        %s223 = ssub.s32 %s21, 1
        // Predicated region
        $region13: #{tpu_custom_call.1} parent=11 // pred_check
          %p224 = pneg %p139
        $region14: #{tpu_custom_call.1} parent=11 // pred_check_branch
          %226 = sbr.rel (%p224) target = $region16
        $region15: #{tpu_custom_call.1} parent=11 // pred_region
          %s227 = smul.u32 2, %s31
          %p228 = scmp.lt.s32.totalorder %s227, 1
          %s229 = scalar_select %p228, %s227, 1
          %s230 = smul.addr %s229, 8
          %s231 = scalar_lea.vmem %s3, %s230
          %s232 = smul.u32 2, %s31
        $region16: #{tpu_custom_call.1} parent=11 // pred_fallthru
          _
        // Predicated region
        $region17: #{tpu_custom_call.1} parent=11 // pred_check
          %p233 = pneg %p160
        $region18: #{tpu_custom_call.1} parent=11 // pred_check_branch
          %235 = sbr.rel (%p233) target = $region20
        $region19: #{tpu_custom_call.1} parent=11 // pred_region
          _
        $region20: #{tpu_custom_call.1} parent=11 // pred_fallthru
          _
        // Predicated region
        $region21: #{tpu_custom_call.1} parent=11 // pred_check
          %p236 = pneg %p181
        $region22: #{tpu_custom_call.1} parent=11 // pred_check_branch
          %238 = sbr.rel (%p236) target = $region24
        $region23: #{tpu_custom_call.1} parent=11 // pred_region
          %s240 = ssub.s32 256, 256
          %241 = vsyncadd [#allocation6], %s240
          %s242 = sshll.u32 [#allocation7], 4
          %s243 = int_to_ptr.vmem [resolvable:$true] %s242
          %248 = dma.hbm_to_vmem [thread:$0]  %s5, 256, %s243, [#allocation6], 128, 128, 8
        $region24: #{tpu_custom_call.1} parent=11 // pred_fallthru
          _
      $region12: #{tpu_custom_call.1} parent=5 // pred_fallthru
        _
      %p249 = scmp.lt.s32.totalorder %s21, 2
      // Predicated region
      $region25: #{tpu_custom_call.1} parent=5 // pred_check
        %p250 = pneg %p249
      $region26: #{tpu_custom_call.1} parent=5 // pred_check_branch
        %252 = sbr.rel (%p250) target = $region28
      $region27: #{tpu_custom_call.1} parent=5 // pred_region
        // Predicated region
        $region29: #{tpu_custom_call.1} parent=27 // pred_check
          %p253 = pneg %p55
        $region30: #{tpu_custom_call.1} parent=27 // pred_check_branch
          %255 = sbr.rel (%p253) target = $region32
        $region31: #{tpu_custom_call.1} parent=27 // pred_region
          %s256 = smul.u32 2, %s29
          %p257 = scmp.lt.s32.totalorder %s28, 1
          %s258 = scalar_select %p257, %s28, 1
          %p259 = scmp.lt.s32.totalorder %s256, 1
          %s260 = scalar_select %p259, %s256, 1
          %s261 = smul.addr %s258, 2
          %s262 = sadd.s32 %s260, %s261
          %s263 = smul.addr %s262, 8
          %s264 = scalar_lea.vmem %s0, %s263
          %s265 = smul.u32 2, %s29
        $region32: #{tpu_custom_call.1} parent=27 // pred_fallthru
          _
        // Predicated region
        $region33: #{tpu_custom_call.1} parent=27 // pred_check
          %p266 = pneg %p81
        $region34: #{tpu_custom_call.1} parent=27 // pred_check_branch
          %268 = sbr.rel (%p266) target = $region36
        $region35: #{tpu_custom_call.1} parent=27 // pred_region
          %s269 = sand.u32 %s71, 1
          %s270 = scalar_lea.sflag [#allocation3], %s269
          %s271 = sand.u32 %s71, 1
          %s272 = smul.addr %s271, 16
          %s273 = scalar_lea.vmem [#allocation2], %s272
          %s275 = ssub.s32 256, 256
          %276 = vsyncadd %s270, %s275
          %s277 = smul.addr %s28, 2
          %s278 = smul.addr %s277, 128
          %s279 = scalar_lea.hbm %s1, %s278
          %s280 = sshll.u32 %s273, 4
          %s281 = int_to_ptr.vmem [resolvable:$true] %s280
          %286 = dma.hbm_to_vmem [thread:$0]  %s279, 256, %s281, %s270, 128, 128, 8
        $region36: #{tpu_custom_call.1} parent=27 // pred_fallthru
          _
        // Predicated region
        $region37: #{tpu_custom_call.1} parent=27 // pred_check
          %p287 = pneg %p107
        $region38: #{tpu_custom_call.1} parent=27 // pred_check_branch
          %289 = sbr.rel (%p287) target = $region40
        $region39: #{tpu_custom_call.1} parent=27 // pred_region
          %s290 = sand.u32 %s21, 1
          %s291 = scalar_lea.sflag [#allocation6], %s290
          %s292 = sand.u32 %s97, 1
          %s293 = smul.addr %s292, 16
          %s294 = scalar_lea.vmem [#allocation5], %s293
          %s296 = ssub.s32 256, 256
          %297 = vsyncadd %s291, %s296
          %s298 = smul.addr %s28, 2
          %s299 = smul.addr %s298, 128
          %s300 = scalar_lea.hbm %s2, %s299
          %s301 = sshll.u32 %s294, 4
          %s302 = int_to_ptr.vmem [resolvable:$true] %s301
          %307 = dma.hbm_to_vmem [thread:$0]  %s300, 256, %s302, %s291, 128, 128, 8
        $region40: #{tpu_custom_call.1} parent=27 // pred_fallthru
          _
      $region28: #{tpu_custom_call.1} parent=5 // pred_fallthru
        _
      %p308 = scmp.le.s32.totalorder 1, %s21
      %p309 = scmp.lt.s32.totalorder %s21, 3
      %p310 = pnand %p308, %p309
      %p311 = pneg %p310
      // Predicated region
      $region41: #{tpu_custom_call.1} parent=5 // pred_check
        _
      $region42: #{tpu_custom_call.1} parent=5 // pred_check_branch
        %313 = sbr.rel (%p310) target = $region44
      $region43: #{tpu_custom_call.1} parent=5 // pred_region
        %s314 = ssub.s32 %s21, 1
        %s315 = sand.u32 %s74, 1
        %s316 = scalar_lea.sflag [#allocation3], %s315
        %s317 = sand.u32 %s74, 1
        %s318 = smul.addr %s317, 16
        %s319 = scalar_lea.vmem [#allocation2], %s318
        // Predicated region
        $region45: #{tpu_custom_call.1} parent=43 // pred_check
          %p320 = pneg %p87
        $region46: #{tpu_custom_call.1} parent=43 // pred_check_branch
          %322 = sbr.rel (%p320) target = $region48
        $region47: #{tpu_custom_call.1} parent=43 // pred_region
          %323 = dma.done %s316, 256
        $region48: #{tpu_custom_call.1} parent=43 // pred_fallthru
          _
        %s324 = sand.u32 %s26, 1
        %s325 = scalar_lea.sflag [#allocation6], %s324
        %s326 = sand.u32 %s100, 1
        %s327 = smul.addr %s326, 16
        %s328 = scalar_lea.vmem [#allocation5], %s327
        // Predicated region
        $region49: #{tpu_custom_call.1} parent=43 // pred_check
          %p329 = pneg %p113
        $region50: #{tpu_custom_call.1} parent=43 // pred_check_branch
          %331 = sbr.rel (%p329) target = $region52
        $region51: #{tpu_custom_call.1} parent=43 // pred_region
          %332 = dma.done %s325, 256
        $region52: #{tpu_custom_call.1} parent=43 // pred_fallthru
          _
        // Predicated region
        $region53: #{tpu_custom_call.1} parent=43 // pred_check
          %p333 = pneg %p181
        $region54: #{tpu_custom_call.1} parent=43 // pred_check_branch
          %335 = sbr.rel (%p333) target = $region56
        $region55: #{tpu_custom_call.1} parent=43 // pred_region
          %336 = dma.done [#allocation6], 256
        $region56: #{tpu_custom_call.1} parent=43 // pred_fallthru
          _
        %s337 = smul.u32 2, %s31
        %p338 = scmp.lt.s32.totalorder %s30, 1
        %s339 = scalar_select %p338, %s30, 1
        %p340 = scmp.lt.s32.totalorder %s337, 1
        %s341 = scalar_select %p340, %s337, 1
        %s342 = smul.addr %s339, 2
        %s343 = sadd.s32 %s341, %s342
        %s344 = smul.addr %s343, 8
        %s345 = scalar_lea.vmem %s0, %s344
        %p346 = pneg %p61
        %p347 = pneg %p58
        %s348 = sand.u32 %s74, 1
        %s349 = scalar_lea.sflag [#allocation3], %s348
        %s350 = sand.u32 %s74, 1
        %s351 = smul.addr %s350, 16
        %s352 = scalar_lea.vmem [#allocation2], %s351
        %p353 = pneg %p87
        %p354 = pneg %p84
        %s355 = sand.u32 %s26, 1
        %s356 = scalar_lea.sflag [#allocation6], %s355
        %s357 = sand.u32 %s100, 1
        %s358 = smul.addr %s357, 16
        %s359 = scalar_lea.vmem [#allocation5], %s358
        %p360 = pneg %p113
        %p361 = pneg %p110
        %s362 = smul.u32 2, %s31
        %p363 = scmp.lt.s32.totalorder %s362, 1
        %s364 = scalar_select %p363, %s362, 1
        %s365 = smul.addr %s364, 8
        %s366 = scalar_lea.vmem %s3, %s365
        %p367 = pneg %p139
        %p368 = pneg %p136
        %p369 = pneg %p160
        %p370 = pneg %p157
        %p371 = pneg %p181
        %p372 = pneg %p178
        %p373 = pneg %p209
        %p374 = pneg %p206
        %s375 = sand.u32 %s196, 1
        %s376 = scalar_lea.sflag [#allocation4], %s375
        %s377 = sand.u32 %s196, 1
        %s378 = smul.addr %s377, 16
        %s379 = scalar_lea.vmem [#allocation8], %s378
        %s380 = smul.u32 2, %s31
        %p381 = scmp.lt.s32.totalorder %s30, 1
        %s382 = scalar_select %p381, %s30, 1
        %p383 = scmp.lt.s32.totalorder %s380, 1
        %s384 = scalar_select %p383, %s380, 1
        %s385 = smul.addr %s382, 2
        %s386 = sadd.s32 %s384, %s385
        %s387 = smul.addr %s386, 8
        %s388 = scalar_lea.vmem %s0, %s387
        %s389 = smul.u32 2, %s31
        %s390 = smul.u32 2, %s31
        %p391 = scmp.lt.s32.totalorder %s390, 1
        %s392 = scalar_select %p391, %s390, 1
        %s393 = smul.addr %s392, 8
        %s394 = scalar_lea.vmem %s3, %s393
        %s395 = smul.u32 2, %s31
        %s396 = smul.u32 2, %s31
        %v398 = vld [vmem:[%s388] sm:$0xff]
        %v399 = vld [vmem:[%s388 + $0x8] sm:$0xff]
        %v400 = vld [vmem:[%s319] sm:$0xff]
        %v401 = vld [vmem:[%s319 + $0x8] sm:$0xff]
        %v402 = vld [vmem:[%s328] sm:$0xff]
        %v403 = vld [vmem:[%s328 + $0x8] sm:$0xff]
        %v404 = vmul.f32 %v400, 0.17677669
        %v405 = vmul.f32 %v401, 0.17677669
        %v406 = vpack.c.bf16 %v405, %v404
        %v407 = vpack.c.bf16 %v399, %v398
        %v408 = vld [vmem:[%s394] sm:$0xff]
        %v409 = vld [vmem:[%s394 + $0x8] sm:$0xff]
        %vm410 = vcmask 261120
        %v412 = vsel %vm410, %v407, 0
        %v415 = vsel %vm410, %v406, 0
        %417 = vmatprep.subr.bf16.mxu0 0
        %418 = vmatpush1.bf16.xpose.msra.mxu0 %v415
        %419 = vmatprep.subr.bf16.mxu0 0
        %420 = vmatpush1.bf16.xpose.msra.mxu0 0
        %421 = vmatprep.subr.bf16.mxu0 0
        %422 = vmatpush1.bf16.xpose.msra.mxu0 0
        %423 = vmatprep.subr.bf16.mxu0 0
        %424 = vmatpush1.bf16.xpose.msra.mxu0 0
        %425 = vmatprep.subr.bf16.mxu0 0
        %426 = vmatpush1.bf16.xpose.msra.mxu0 0
        %427 = vmatprep.subr.bf16.mxu0 0
        %428 = vmatpush1.bf16.xpose.msra.mxu0 0
        %429 = vmatprep.subr.bf16.mxu0 0
        %430 = vmatpush1.bf16.xpose.msra.mxu0 0
        %431 = vmatprep.subr.bf16.mxu0 0
        %432 = vmatpush1.bf16.xpose.msra.mxu0 0
        %433 = vmatprep.subr.bf16.mxu0 0
        %434 = vmatpush1.bf16.xpose.msra.mxu0 0
        %435 = vmatprep.subr.bf16.mxu0 0
        %436 = vmatpush1.bf16.xpose.msra.mxu0 0
        %437 = vmatprep.subr.bf16.mxu0 0
        %438 = vmatpush1.bf16.xpose.msra.mxu0 0
        %439 = vmatprep.subr.bf16.mxu0 0
        %440 = vmatpush1.bf16.xpose.msra.mxu0 0
        %441 = vmatprep.subr.bf16.mxu0 0
        %442 = vmatpush1.bf16.xpose.msra.mxu0 0
        %443 = vmatprep.subr.bf16.mxu0 0
        %444 = vmatpush1.bf16.xpose.msra.mxu0 0
        %445 = vmatprep.subr.bf16.mxu0 0
        %446 = vmatpush1.bf16.xpose.msra.mxu0 0
        %447 = vmatprep.subr.bf16.mxu0 0
        %448 = vmatpush1.bf16.xpose.msra.mxu0 0
        %449 = vmatprep.mubr.bf16.mxu0 0
        %450 = vmatmul.mubr.bf16.gmra.mrb[0].mxu0 %v412
        %v451 = vpop.f32.mrb[0].mxu0
        %v452 = vadd.f32 %v408, %v451
        %v453 = vpop.f32.mrb[0].mxu0
        %v454 = vpop.f32.mrb[0].mxu0
        %v455 = vadd.f32 %v409, %v454
        %v456 = vpop.f32.mrb[0].mxu0
        %457 = vdwg.mxu0
        %v458 = vxor.u32 %v452, 2147483648
        %v459 = vxor.u32 %v455, 2147483648
        %v460 = vmul.f32 %v458, 1.442695
        %v461 = vpow.pop %v460
        %v462 = vmul.f32 %v459, 1.442695
        %v463 = vpow.pop %v462
        %v464 = vadd.f32 %v461, 1.0
        %v465 = vadd.f32 %v463, 1.0
        %v466 = vrcp.pop %v464
        %v467 = vmul.f32 1.0, %v466
        %v468 = vrcp.pop %v465
        %v469 = vmul.f32 1.0, %v468
        %v470 = vld [vmem:[#allocation7] sm:$0xff]
        %v471 = vld [vmem:[#allocation7 + $0x8] sm:$0xff]
        %vm472 = vcmask 130048
        %v474 = vsel %vm472, %v467, 0
        %v477 = vsel %vm472, %v469, 0
        %479 = vmatprep.subr.mxu0 0.0
        %480 = vmatpush1.msra.mxu0 %v470
        %481 = vmatprep.subr.mxu0 0.0
        %482 = vmatpush1.msra.mxu0 %v471
        %483 = vmatprep.subr.mxu0 0.0
        %484 = vmatpush1.msra.mxu0 0.0
        %485 = vmatprep.subr.mxu0 0.0
        %486 = vmatpush1.msra.mxu0 0.0
        %487 = vmatprep.subr.mxu0 0.0
        %488 = vmatpush1.msra.mxu0 0.0
        %489 = vmatprep.subr.mxu0 0.0
        %490 = vmatpush1.msra.mxu0 0.0
        %491 = vmatprep.subr.mxu0 0.0
        %492 = vmatpush1.msra.mxu0 0.0
        %493 = vmatprep.subr.mxu0 0.0
        %494 = vmatpush1.msra.mxu0 0.0
        %495 = vmatprep.subr.mxu0 0.0
        %496 = vmatpush1.msra.mxu0 0.0
        %497 = vmatprep.subr.mxu0 0.0
        %498 = vmatpush1.msra.mxu0 0.0
        %499 = vmatprep.subr.mxu0 0.0
        %500 = vmatpush1.msra.mxu0 0.0
        %501 = vmatprep.subr.mxu0 0.0
        %502 = vmatpush1.msra.mxu0 0.0
        %503 = vmatprep.subr.mxu0 0.0
        %504 = vmatpush1.msra.mxu0 0.0
        %505 = vmatprep.subr.mxu0 0.0
        %506 = vmatpush1.msra.mxu0 0.0
        %507 = vmatprep.subr.mxu0 0.0
        %508 = vmatpush1.msra.mxu0 0.0
        %509 = vmatprep.subr.mxu0 0.0
        %510 = vmatpush1.msra.mxu0 0.0
        %511 = vmatprep.subr.mxu0 0.0
        %512 = vmatpush1.msra.mxu0 0.0
        %513 = vmatprep.subr.mxu0 0.0
        %514 = vmatpush1.msra.mxu0 0.0
        %515 = vmatprep.subr.mxu0 0.0
        %516 = vmatpush1.msra.mxu0 0.0
        %517 = vmatprep.subr.mxu0 0.0
        %518 = vmatpush1.msra.mxu0 0.0
        %519 = vmatprep.subr.mxu0 0.0
        %520 = vmatpush1.msra.mxu0 0.0
        %521 = vmatprep.subr.mxu0 0.0
        %522 = vmatpush1.msra.mxu0 0.0
        %523 = vmatprep.subr.mxu0 0.0
        %524 = vmatpush1.msra.mxu0 0.0
        %525 = vmatprep.subr.mxu0 0.0
        %526 = vmatpush1.msra.mxu0 0.0
        %527 = vmatprep.subr.mxu0 0.0
        %528 = vmatpush1.msra.mxu0 0.0
        %529 = vmatprep.subr.mxu0 0.0
        %530 = vmatpush1.msra.mxu0 0.0
        %531 = vmatprep.subr.mxu0 0.0
        %532 = vmatpush1.msra.mxu0 0.0
        %533 = vmatprep.subr.mxu0 0.0
        %534 = vmatpush1.msra.mxu0 0.0
        %535 = vmatprep.subr.mxu0 0.0
        %536 = vmatpush1.msra.mxu0 0.0
        %537 = vmatprep.subr.mxu0 0.0
        %538 = vmatpush1.msra.mxu0 0.0
        %539 = vmatprep.subr.mxu0 0.0
        %540 = vmatpush1.msra.mxu0 0.0
        %541 = vmatprep.subr.mxu0 0.0
        %542 = vmatpush1.msra.mxu0 0.0
        %543 = vmatprep.mubr.f32.mxu0 0.0
        %544 = vmatmul.mubr.f32.gmra.mrb[0].mxu0 %v474
        %v545 = vpop.f32.mrb[0].mxu0
        %v546 = vadd.f32 0.0, %v545
        %v547 = vpop.f32.mrb[0].mxu0
        %548 = vmatprep.mubr.f32.mxu0 0.0
        %549 = vmatmul.mubr.f32.gmra.mrb[0].mxu0 %v477
        %v550 = vpop.f32.mrb[0].mxu0
        %v551 = vadd.f32 0.0, %v550
        %v552 = vpop.f32.mrb[0].mxu0
        %553 = vdwg.mxu0
        %v554 = vmin.f32 %v546, 7.0
        %v555 = vmin.f32 %v551, 7.0
        %v556 = vld [vmem:[%s4] sm:$0xff]
        %v557 = vld [vmem:[%s4 + $0x8] sm:$0xff]
        %v558 = vld [vmem:[%s4 + $0x10] sm:$0xff]
        %v559 = vld [vmem:[%s4 + $0x18] sm:$0xff]
        %v561 = vsel %vm410, %v398, 0
        %v564 = vsel %vm410, %v399, 0
        %566 = vmatprep.subr.mxu0 0.0
        %567 = vmatpush1.msra.mxu0 %v556
        %568 = vmatprep.subr.mxu0 0.0
        %569 = vmatpush1.msra.mxu0 %v557
        %570 = vmatprep.subr.mxu0 0.0
        %571 = vmatpush1.msra.mxu0 %v558
        %572 = vmatprep.subr.mxu0 0.0
        %573 = vmatpush1.msra.mxu0 %v559
        %574 = vmatprep.subr.mxu0 0.0
        %575 = vmatpush1.msra.mxu0 0.0
        %576 = vmatprep.subr.mxu0 0.0
        %577 = vmatpush1.msra.mxu0 0.0
        %578 = vmatprep.subr.mxu0 0.0
        %579 = vmatpush1.msra.mxu0 0.0
        %580 = vmatprep.subr.mxu0 0.0
        %581 = vmatpush1.msra.mxu0 0.0
        %582 = vmatprep.subr.mxu0 0.0
        %583 = vmatpush1.msra.mxu0 0.0
        %584 = vmatprep.subr.mxu0 0.0
        %585 = vmatpush1.msra.mxu0 0.0
        %586 = vmatprep.subr.mxu0 0.0
        %587 = vmatpush1.msra.mxu0 0.0
        %588 = vmatprep.subr.mxu0 0.0
        %589 = vmatpush1.msra.mxu0 0.0
        %590 = vmatprep.subr.mxu0 0.0
        %591 = vmatpush1.msra.mxu0 0.0
        %592 = vmatprep.subr.mxu0 0.0
        %593 = vmatpush1.msra.mxu0 0.0
        %594 = vmatprep.subr.mxu0 0.0
        %595 = vmatpush1.msra.mxu0 0.0
        %596 = vmatprep.subr.mxu0 0.0
        %597 = vmatpush1.msra.mxu0 0.0
        %598 = vmatprep.subr.mxu0 0.0
        %599 = vmatpush1.msra.mxu0 0.0
        %600 = vmatprep.subr.mxu0 0.0
        %601 = vmatpush1.msra.mxu0 0.0
        %602 = vmatprep.subr.mxu0 0.0
        %603 = vmatpush1.msra.mxu0 0.0
        %604 = vmatprep.subr.mxu0 0.0
        %605 = vmatpush1.msra.mxu0 0.0
        %606 = vmatprep.subr.mxu0 0.0
        %607 = vmatpush1.msra.mxu0 0.0
        %608 = vmatprep.subr.mxu0 0.0
        %609 = vmatpush1.msra.mxu0 0.0
        %610 = vmatprep.subr.mxu0 0.0
        %611 = vmatpush1.msra.mxu0 0.0
        %612 = vmatprep.subr.mxu0 0.0
        %613 = vmatpush1.msra.mxu0 0.0
        %614 = vmatprep.subr.mxu0 0.0
        %615 = vmatpush1.msra.mxu0 0.0
        %616 = vmatprep.subr.mxu0 0.0
        %617 = vmatpush1.msra.mxu0 0.0
        %618 = vmatprep.subr.mxu0 0.0
        %619 = vmatpush1.msra.mxu0 0.0
        %620 = vmatprep.subr.mxu0 0.0
        %621 = vmatpush1.msra.mxu0 0.0
        %622 = vmatprep.subr.mxu0 0.0
        %623 = vmatpush1.msra.mxu0 0.0
        %624 = vmatprep.subr.mxu0 0.0
        %625 = vmatpush1.msra.mxu0 0.0
        %626 = vmatprep.subr.mxu0 0.0
        %627 = vmatpush1.msra.mxu0 0.0
        %628 = vmatprep.subr.mxu0 0.0
        %629 = vmatpush1.msra.mxu0 0.0
        %630 = vmatprep.mubr.f32.mxu0 0.0
        %631 = vmatmul.mubr.f32.gmra.mrb[0].mxu0 %v561
        %v632 = vpop.f32.mrb[0].mxu0
        %v633 = vadd.f32 0.0, %v632
        %v634 = vpop.f32.mrb[0].mxu0
        %635 = vmatprep.mubr.f32.mxu0 0.0
        %636 = vmatmul.mubr.f32.gmra.mrb[0].mxu0 %v564
        %v637 = vpop.f32.mrb[0].mxu0
        %v638 = vadd.f32 0.0, %v637
        %v639 = vpop.f32.mrb[0].mxu0
        %640 = vdwg.mxu0
        %v641 = vfloor.f32 %v554
        %v642 = vfloor.f32 %v555
        %v643 = vsub.f32 %v554, %v641
        %v644 = vsub.f32 %v555, %v642
        %vm645 = vcmp.eq.f32.partialorder %v641, 0.0
        %vm646 = vcmp.eq.f32.partialorder %v642, 0.0
        %648 = vset.pattern.permute.xlu0 0
        %649 = vperm.xlu0 %648, %v633
        %v650 = vpop.permute.xlu0 %649
        %653 = vset.pattern.permute.xlu0 0
        %654 = vperm.xlu0 %653, %v638
        %v655 = vpop.permute.xlu0 %654
        %v657 = vsel %vm645, %v650, 0.0
        %v658 = vsel %vm646, %v655, 0.0
        %659 = vset.pattern.permute.xlu0 1
        %660 = vperm.xlu0 %659, %v633
        %v661 = vpop.permute.xlu0 %660
        %663 = vset.pattern.permute.xlu0 1
        %664 = vperm.xlu0 %663, %v638
        %v665 = vpop.permute.xlu0 %664
        %v667 = vsel %vm645, %v661, 0.0
        %v668 = vsel %vm646, %v665, 0.0
        %vm669 = vcmp.eq.f32.partialorder %v641, 1.0
        %vm670 = vcmp.eq.f32.partialorder %v642, 1.0
        %v671 = vsel %vm669, %v661, %v657
        %v672 = vsel %vm670, %v665, %v658
        %673 = vset.pattern.permute.xlu0 2
        %674 = vperm.xlu0 %673, %v633
        %v675 = vpop.permute.xlu0 %674
        %677 = vset.pattern.permute.xlu0 2
        %678 = vperm.xlu0 %677, %v638
        %v679 = vpop.permute.xlu0 %678
        %v681 = vsel %vm669, %v675, %v667
        %v682 = vsel %vm670, %v679, %v668
        %vm683 = vcmp.eq.f32.partialorder %v641, 2.0
        %vm684 = vcmp.eq.f32.partialorder %v642, 2.0
        %v685 = vsel %vm683, %v675, %v671
        %v686 = vsel %vm684, %v679, %v672
        %687 = vset.pattern.permute.xlu0 3
        %688 = vperm.xlu0 %687, %v633
        %v689 = vpop.permute.xlu0 %688
        %691 = vset.pattern.permute.xlu0 3
        %692 = vperm.xlu0 %691, %v638
        %v693 = vpop.permute.xlu0 %692
        %v695 = vsel %vm683, %v689, %v681
        %v696 = vsel %vm684, %v693, %v682
        %vm697 = vcmp.eq.f32.partialorder %v641, 3.0
        %vm698 = vcmp.eq.f32.partialorder %v642, 3.0
        %v699 = vsel %vm697, %v689, %v685
        %v700 = vsel %vm698, %v693, %v686
        %701 = vset.pattern.permute.xlu0 4
        %702 = vperm.xlu0 %701, %v633
        %v703 = vpop.permute.xlu0 %702
        %705 = vset.pattern.permute.xlu0 4
        %706 = vperm.xlu0 %705, %v638
        %v707 = vpop.permute.xlu0 %706
        %v709 = vsel %vm697, %v703, %v695
        %v710 = vsel %vm698, %v707, %v696
        %vm711 = vcmp.eq.f32.partialorder %v641, 4.0
        %vm712 = vcmp.eq.f32.partialorder %v642, 4.0
        %v713 = vsel %vm711, %v703, %v699
        %v714 = vsel %vm712, %v707, %v700
        %715 = vset.pattern.permute.xlu0 5
        %716 = vperm.xlu0 %715, %v633
        %v717 = vpop.permute.xlu0 %716
        %719 = vset.pattern.permute.xlu0 5
        %720 = vperm.xlu0 %719, %v638
        %v721 = vpop.permute.xlu0 %720
        %v723 = vsel %vm711, %v717, %v709
        %v724 = vsel %vm712, %v721, %v710
        %vm725 = vcmp.eq.f32.partialorder %v641, 5.0
        %vm726 = vcmp.eq.f32.partialorder %v642, 5.0
        %v727 = vsel %vm725, %v717, %v713
        %v728 = vsel %vm726, %v721, %v714
        %729 = vset.pattern.permute.xlu0 6
        %730 = vperm.xlu0 %729, %v633
        %v731 = vpop.permute.xlu0 %730
        %733 = vset.pattern.permute.xlu0 6
        %734 = vperm.xlu0 %733, %v638
        %v735 = vpop.permute.xlu0 %734
        %v737 = vsel %vm725, %v731, %v723
        %v738 = vsel %vm726, %v735, %v724
        %vm739 = vcmp.eq.f32.partialorder %v641, 6.0
        %vm740 = vcmp.eq.f32.partialorder %v642, 6.0
        %v741 = vsel %vm739, %v731, %v727
        %v742 = vsel %vm740, %v735, %v728
        %743 = vset.pattern.permute.xlu0 7
        %744 = vperm.xlu0 %743, %v633
        %v745 = vpop.permute.xlu0 %744
        %747 = vset.pattern.permute.xlu0 7
        %748 = vperm.xlu0 %747, %v638
        %v749 = vpop.permute.xlu0 %748
        %v751 = vsel %vm739, %v745, %v737
        %v752 = vsel %vm740, %v749, %v738
        %vm753 = vcmp.eq.f32.partialorder %v641, 7.0
        %vm754 = vcmp.eq.f32.partialorder %v642, 7.0
        %v755 = vsel %vm753, %v745, %v741
        %v756 = vsel %vm754, %v749, %v742
        %v757 = vsel %vm753, %v745, %v751
        %v758 = vsel %vm754, %v749, %v752
        %v759 = vsub.f32 %v757, %v755
        %v760 = vsub.f32 %v758, %v756
        %v761 = vmul.f32 %v643, %v759
        %v762 = vmul.f32 %v644, %v760
        %v763 = vadd.f32 %v755, %v761
        %v764 = vadd.f32 %v756, %v762
        %v765 = vadd.f32 %v452, %v763
        %v766 = vadd.f32 %v455, %v764
        %v767 = vsel %vm472, %v765, -inf
        %768 = vmax.xlane.f32.xlu0 %v767
        %v769 = vpop.xlane.xlu0 %768
        %v770 = vsel %vm472, %v766, -inf
        %771 = vmax.xlane.f32.xlu0 %v770
        %v772 = vpop.xlane.xlu0 %771
        %v773 = vsub.f32 %v765, %v769
        %v774 = vsub.f32 %v766, %v772
        %v775 = vmul.f32 %v773, 1.442695
        %v776 = vpow.pop %v775
        %v777 = vmul.f32 %v774, 1.442695
        %v778 = vpow.pop %v777
        %v779 = vsel %vm472, %v776, 0.0
        %780 = vadd.xlane.f32.xlu0 %v779
        %v781 = vpop.xlane.xlu0 %780
        %v782 = vsel %vm472, %v778, 0.0
        %783 = vadd.xlane.f32.xlu0 %v782
        %v784 = vpop.xlane.xlu0 %783
        %v785 = vpack.c.bf16 %v778, %v776
        %v786 = vpack.c.bf16 %v403, %v402
        %v788 = vsel %vm472, %v785, 0
        %790 = vmatprep.subr.bf16.mxu0 0
        %791 = vmatpush1.bf16.msra.mxu0 %v786
        %792 = vmatprep.subr.bf16.mxu0 0
        %793 = vmatpush1.bf16.msra.mxu0 0
        %794 = vmatprep.subr.bf16.mxu0 0
        %795 = vmatpush1.bf16.msra.mxu0 0
        %796 = vmatprep.subr.bf16.mxu0 0
        %797 = vmatpush1.bf16.msra.mxu0 0
        %798 = vmatprep.subr.bf16.mxu0 0
        %799 = vmatpush1.bf16.msra.mxu0 0
        %800 = vmatprep.subr.bf16.mxu0 0
        %801 = vmatpush1.bf16.msra.mxu0 0
        %802 = vmatprep.subr.bf16.mxu0 0
        %803 = vmatpush1.bf16.msra.mxu0 0
        %804 = vmatprep.subr.bf16.mxu0 0
        %805 = vmatpush1.bf16.msra.mxu0 0
        %806 = vmatprep.subr.bf16.mxu0 0
        %807 = vmatpush1.bf16.msra.mxu0 0
        %808 = vmatprep.subr.bf16.mxu0 0
        %809 = vmatpush1.bf16.msra.mxu0 0
        %810 = vmatprep.subr.bf16.mxu0 0
        %811 = vmatpush1.bf16.msra.mxu0 0
        %812 = vmatprep.subr.bf16.mxu0 0
        %813 = vmatpush1.bf16.msra.mxu0 0
        %814 = vmatprep.subr.bf16.mxu0 0
        %815 = vmatpush1.bf16.msra.mxu0 0
        %816 = vmatprep.subr.bf16.mxu0 0
        %817 = vmatpush1.bf16.msra.mxu0 0
        %818 = vmatprep.subr.bf16.mxu0 0
        %819 = vmatpush1.bf16.msra.mxu0 0
        %820 = vmatprep.subr.bf16.mxu0 0
        %821 = vmatpush1.bf16.msra.mxu0 0
        %822 = vmatprep.mubr.bf16.mxu0 0
        %823 = vmatmul.mubr.bf16.gmra.mrb[0].mxu0 %v788
        %v824 = vpop.f32.mrb[0].mxu0
        %v825 = vadd.f32 0.0, %v824
        %v826 = vpop.f32.mrb[0].mxu0
        %v827 = vpop.f32.mrb[0].mxu0
        %v828 = vadd.f32 0.0, %v827
        %v829 = vpop.f32.mrb[0].mxu0
        %830 = vdwg.mxu0
        %v831 = vrcp.pop %v781
        %v832 = vrcp.pop %v784
        %v833 = vmul.f32 %v825, %v831
        %v834 = vmul.f32 %v828, %v832
        %835 = vst.msk [vmem:[%s379] sm:$0xff] %vm410, %v833
        %836 = vst.msk [vmem:[%s379 + $0x8] sm:$0xff] %vm410, %v834
        %s837 = sand.u32 %s196, 1
        %s838 = scalar_lea.sflag [#allocation4], %s837
        %s839 = sand.u32 %s196, 1
        %s840 = smul.addr %s839, 16
        %s841 = scalar_lea.vmem [#allocation8], %s840
        // Predicated region
        $region57: #{tpu_custom_call.1} parent=43 // pred_check
          %p842 = pneg %p206
        $region58: #{tpu_custom_call.1} parent=43 // pred_check_branch
          %844 = sbr.rel (%p842) target = $region60
        $region59: #{tpu_custom_call.1} parent=43 // pred_region
          %s845 = smul.u32 2, %s31
          %s847 = ssub.s32 256, 256
          %848 = vsyncadd %s838, %s847
          %s849 = smul.addr %s30, 2
          %s850 = sadd.s32 %s845, %s849
          %s851 = smul.addr %s850, 128
          %s852 = scalar_lea.hbm %s6, %s851
          %s853 = sshll.u32 %s841, 4
          %s854 = int_to_ptr.vmem [resolvable:$true] %s853
          %859 = dma.vmem_to_hbm [thread:$0]  %s854, 256, %s852, %s838, 128, 128, 8
        $region60: #{tpu_custom_call.1} parent=43 // pred_fallthru
          _
      $region44: #{tpu_custom_call.1} parent=5 // pred_fallthru
        _
      %p860 = scmp.le.s32.totalorder 2, %s21
      // Predicated region
      $region61: #{tpu_custom_call.1} parent=5 // pred_check
        %p861 = pneg %p860
      $region62: #{tpu_custom_call.1} parent=5 // pred_check_branch
        %863 = sbr.rel (%p861) target = $region64
      $region63: #{tpu_custom_call.1} parent=5 // pred_region
        %s864 = ssub.s32 %s21, 2
        // Predicated region
        $region65: #{tpu_custom_call.1} parent=63 // pred_check
          %p865 = pneg %p212
        $region66: #{tpu_custom_call.1} parent=63 // pred_check_branch
          %867 = sbr.rel (%p865) target = $region68
        $region67: #{tpu_custom_call.1} parent=63 // pred_region
          %s868 = sand.u32 %s197, 1
          %s869 = scalar_lea.sflag [#allocation4], %s868
          %s870 = sand.u32 %s197, 1
          %s871 = smul.addr %s870, 16
          %s872 = scalar_lea.vmem [#allocation8], %s871
          %873 = dma.done %s869, 256
        $region68: #{tpu_custom_call.1} parent=63 // pred_fallthru
          _
      $region64: #{tpu_custom_call.1} parent=5 // pred_fallthru
        _
    $region6: #{tpu_custom_call.1} parent=1 // loop_footer
      %s25 = sadd.s32 1, %s21
    $region7: #{tpu_custom_call.1} parent=1 // loop_footer_branch
      %20 = sbr.rel target = $region3
    $region8: #{tpu_custom_call.1} parent=1 // loop_exit
      _
    %874 = vsyncpa [#allocation3], 1
    %s875 = scalar_lea.sflag [#allocation3], 1
    %876 = vsyncpa %s875, 1
    %877 = vsyncpa [#allocation6], 1
    %s878 = scalar_lea.sflag [#allocation6], 1
    %879 = vsyncpa %s878, 1
    %880 = vsyncpa [#allocation4], 1
    %s881 = scalar_lea.sflag [#allocation4], 1
    %882 = vsyncpa %s881, 1

</llo_original>
